<compile_context>
chip_gen: v6e
topology: v6e:2x2x1
jax: 0.10.0
libtpu: 0.0.40
codegen_flags: <defaults>
</compile_context>

<pallas_src>
import functools

import jax
import jax.numpy as jnp
from jax.experimental import pallas as pl
from jax.experimental.pallas import tpu as pltpu


def _round_up(x, m):
    return (x + m - 1) // m * m


def _vmem_capacity_bytes():
    """Best-effort per-core VMEM capacity; conservative default if unknown."""
    try:
        info = pltpu.get_tpu_info()
        cap = getattr(info, "vmem_capacity_bytes", None)
        if cap:
            return int(cap)
    except Exception:
        pass
    return 64 << 20  # v7x per-TensorCore VMEM; safe lower bound everywhere


def _bert_self_output_kernel(x_ref, res_ref, wt_ref, params_ref, o_ref, *,
                             eps, h_logical, hp):
    # x_ref, res_ref, o_ref : [TM, Hp]
    # wt_ref                : [Hp, Hp]  (pre-transposed weight, in x out)
    # params_ref            : [3, Hp]   f32 rows = (bias, gamma, beta)
    x = x_ref[...]            # native dtype -> fast MXU path for bf16
    wt = wt_ref[...]
    params = params_ref[...]  # f32
    bias = params[0:1, :]
    gamma = params[1:2, :]
    beta = params[2:3, :]

    # dense: x @ W^T + b  (MXU, f32 accumulation), then residual add in f32.
    h = jnp.dot(x, wt, preferred_element_type=jnp.float32)
    h = h + bias + res_ref[...].astype(jnp.float32)

    # dropout: identity in inference mode
    # TODO(synk): training-mode dropout (pltpu.prng_random_bits mask) not emitted.

    # LayerNorm over the logical hidden width (two-pass for PyTorch-like
    # numerics).  Padded lanes of h are exactly zero, so sum(h) over the full
    # width equals the logical sum; the centered pass masks padded lanes.
    inv_h = jnp.float32(1.0 / h_logical)
    mean = jnp.sum(h, axis=-1, keepdims=True) * inv_h
    d = h - mean
    if hp != h_logical:
        lane = jax.lax.broadcasted_iota(jnp.int32, (1, hp), 1)
        d = jnp.where(lane < h_logical, d, 0.0)
    var = jnp.sum(d * d, axis=-1, keepdims=True) * inv_h
    inv = jax.lax.rsqrt(var + eps)

    o_ref[...] = (d * inv * gamma + beta).astype(o_ref.dtype)


def bert_self_output(hidden_states, input_tensor, weight, bias, gamma, beta,
                     *, eps=1e-12, dropout_prob=0.0, matmul_dtype=None):
    """hidden_states, input_tensor: [B, S, H]; weight: [H, H] (PyTorch out x in);
    bias/gamma/beta: [H]."""
    # Inference-only kernel: dropout must be a no-op.
    assert dropout_prob == 0.0, "training-mode dropout not implemented in kernel"

    B, S, H = hidden_states.shape
    T = B * S
    out_dtype = hidden_states.dtype
    Hp = _round_up(H, 128)

    x2 = hidden_states.reshape(T, H)
    r2 = input_tensor.reshape(T, H)
    w_t = weight.T  # hoisted transpose: [H_in, H_out], done once in XLA

    if matmul_dtype is not None:
        # Opt-in reduced-precision MXU / HBM path (accumulation stays f32).
        x2 = x2.astype(matmul_dtype)
        w_t = w_t.astype(matmul_dtype)

    if Hp != H:
        # Lane padding only (real BERT hidden sizes are multiples of 128 and
        # skip this).  Padded lanes stay exactly zero through dense+residual.
        x2 = jnp.pad(x2, ((0, 0), (0, Hp - H)))
        r2 = jnp.pad(r2, ((0, 0), (0, Hp - H)))
        w_t = jnp.pad(w_t, ((0, Hp - H), (0, Hp - H)))
        bias = jnp.pad(bias, (0, Hp - H))
        gamma = jnp.pad(gamma, (0, Hp - H))
        beta = jnp.pad(beta, (0, Hp - H))

    params = jnp.stack([bias, gamma, beta]).astype(jnp.float32)  # (3, Hp)

    # ---- per-chip tile sizing -------------------------------------------
    itemsizes = [jnp.dtype(d).itemsize for d in (x2.dtype, r2.dtype, out_dtype)]
    w_itemsize = jnp.dtype(w_t.dtype).itemsize
    sub = max(8, 32 // min(itemsizes))          # sublane multiple for TM

    vmem_cap = _vmem_capacity_bytes()
    vmem_limit = int(vmem_cap * 0.85)           # leave headroom under physical

    # Budget: double-buffered x/res/out tiles + ~2x f32 intermediates per row;
    # weight counted at 2 buffers so the non-Buffered fallback also fits.
    per_row = 2 * Hp * sum(itemsizes) + 2 * Hp * 4
    resident_bytes = 2 * Hp * Hp * w_itemsize + 2 * 3 * Hp * 4
    tile_budget = max(vmem_limit - resident_bytes - (2 << 20), per_row * sub)

    cap_tm = 1024 if min(itemsizes) <= 2 else 512
    TM = min(cap_tm, max(sub, tile_budget // per_row))
    TM = max(sub, (TM // sub) * sub)
    TM = min(TM, _round_up(T, sub))
    # Keep >= 2 grid steps so the "parallel" axis can span both v7x cores.
    while pl.cdiv(T, TM) < 2 and TM > sub:
        TM = max(sub, ((TM // 2) // sub) * sub)

    grid = (pl.cdiv(T, TM),)

    cost = pl.CostEstimate(
        flops=2 * T * Hp * Hp + 8 * T * Hp,
        transcendentals=T,  # one rsqrt per token row
        bytes_accessed=(T * Hp * sum(itemsizes)          # x + residual + out
                        + Hp * Hp * w_itemsize           # resident weight
                        + 3 * Hp * 4),                   # bias/gamma/beta (f32)
    )

    kernel = functools.partial(_bert_self_output_kernel, eps=float(eps),
                               h_logical=H, hp=Hp)

    def run(use_buffered):
        resident = {"pipeline_mode": pl.Buffered(1)} if use_buffered else {}
        return pl.pallas_call(
            kernel,
            out_shape=jax.ShapeDtypeStruct((T, Hp), out_dtype),
            grid_spec=pltpu.PrefetchScalarGridSpec(
                num_scalar_prefetch=0,
                grid=grid,
                in_specs=[
                    pl.BlockSpec((TM, Hp), lambda i: (i, 0)),             # x
                    pl.BlockSpec((TM, Hp), lambda i: (i, 0)),             # residual
                    pl.BlockSpec((Hp, Hp), lambda i: (0, 0), **resident),  # W^T
                    pl.BlockSpec((3, Hp), lambda i: (0, 0), **resident),   # b/g/b
                ],
                out_specs=pl.BlockSpec((TM, Hp), lambda i: (i, 0)),
            ),
            compiler_params=pltpu.CompilerParams(
                dimension_semantics=("parallel",),
                vmem_limit_bytes=vmem_limit),
            cost_estimate=cost,
        )(x2, r2, w_t, params)

    try:
        out = run(True)
    except Exception:
        # This JAX/backend build rejects pipeline_mode=Buffered(1) on the
        # top-level pallas_call: fall back to default double buffering.
        out = run(False)

    if Hp != H:
        out = out[:, :H]
    return out.reshape(B, S, H)


if __name__ == "__main__":
    # Small config: batch=2, seq=8, hidden=32
    B, S, H = 2, 8, 32
    eps = 1e-12

    key = jax.random.PRNGKey(0)
    k1, k2, k3, k4 = jax.random.split(key, 4)

    hidden_states = jax.random.normal(k1, (B, S, H), dtype=jnp.float32)
    input_tensor = jax.random.normal(k2, (B, S, H), dtype=jnp.float32)

    # Deterministic parameter init (synthetic, Linear-like scale).
    bound = 1.0 / (H ** 0.5)
    weight = jax.random.uniform(k3, (H, H), minval=-bound, maxval=bound,
                                dtype=jnp.float32)
    bias = jax.random.uniform(k4, (H,), minval=-bound, maxval=bound,
                              dtype=jnp.float32)
    gamma = jnp.ones((H,), dtype=jnp.float32)
    beta = jnp.zeros((H,), dtype=jnp.float32)

    def reference(hs, it):
        h = hs @ weight.T + bias + it
        mu = h.mean(-1, keepdims=True)
        var = ((h - mu) ** 2).mean(-1, keepdims=True)
        return (h - mu) / jnp.sqrt(var + eps) * gamma + beta

    out = bert_self_output(hidden_states, input_tensor, weight, bias,
                           gamma, beta, eps=eps)
    jax.block_until_ready(out)
    assert jnp.allclose(out, reference(hidden_states, input_tensor),
                        atol=1e-5, rtol=1e-5), "mismatch vs reference"

    # Ragged token count (T not a multiple of TM) exercises the pad-free path.
    B2, S2 = 1, 9
    hs2 = jax.random.normal(k1, (B2, S2, H), dtype=jnp.float32)
    it2 = jax.random.normal(k2, (B2, S2, H), dtype=jnp.float32)
    out2 = bert_self_output(hs2, it2, weight, bias, gamma, beta, eps=eps)
    jax.block_until_ready(out2)
    assert jnp.allclose(out2, reference(hs2, it2),
                        atol=1e-5, rtol=1e-5), "mismatch vs reference (ragged)"

    print("KERNEL_OK")
</pallas_src>

<mosaic_0001>
module attributes {stable_mosaic.version = 11 : i64} {
  func.func @_bert_self_output_kernel(%arg0: i32, %arg1: memref<8x128xf32, #tpu.memory_space<vmem>>, %arg2: memref<8x128xf32, #tpu.memory_space<vmem>>, %arg3: memref<128x128xf32, #tpu.memory_space<vmem>>, %arg4: memref<3x128xf32, #tpu.memory_space<vmem>>, %arg5: memref<8x128xf32, #tpu.memory_space<vmem>>) attributes {dimension_semantics = [#tpu.dimension_semantics<parallel>], iteration_bounds = array<i64: 2>, scalar_prefetch = 0 : i64, scratch_operands = 0 : i64, tpu.core_type = #tpu.core_type<tc>, window_params = [{transform_indices = @transform_0, window_bounds = array<i64: 8, 128>}, {transform_indices = @transform_1, window_bounds = array<i64: 8, 128>}, {pipeline_mode = #tpu.pipeline_mode<synchronous>, transform_indices = @transform_2, window_bounds = array<i64: 128, 128>}, {pipeline_mode = #tpu.pipeline_mode<synchronous>, transform_indices = @transform_3, window_bounds = array<i64: 3, 128>}, {transform_indices = @transform_4, window_bounds = array<i64: 8, 128>}]} {
    %c0 = arith.constant 0 : index
    %c0_0 = arith.constant 0 : index
    %0 = vector.load %arg1[%c0, %c0_0] : memref<8x128xf32, #tpu.memory_space<vmem>>, vector<8x128xf32>
    %c0_1 = arith.constant 0 : index
    %c0_2 = arith.constant 0 : index
    %1 = vector.load %arg3[%c0_1, %c0_2] : memref<128x128xf32, #tpu.memory_space<vmem>>, vector<128x128xf32>
    %c0_3 = arith.constant 0 : index
    %c0_4 = arith.constant 0 : index
    %2 = vector.load %arg4[%c0_3, %c0_4] : memref<3x128xf32, #tpu.memory_space<vmem>>, vector<3x128xf32>
    %3 = vector.extract_strided_slice %2 {offsets = [0, 0], sizes = [1, 128], strides = [1, 1]} : vector<3x128xf32> to vector<1x128xf32>
    %4 = vector.extract_strided_slice %2 {offsets = [1, 0], sizes = [1, 128], strides = [1, 1]} : vector<3x128xf32> to vector<1x128xf32>
    %5 = vector.extract_strided_slice %2 {offsets = [2, 0], sizes = [1, 128], strides = [1, 1]} : vector<3x128xf32> to vector<1x128xf32>
    %cst = arith.constant dense<0.000000e+00> : vector<8x128xf32>
    %6 = tpu.matmul %0, %1, %cst {dimension_numbers = #tpu.dot_dimension_numbers<[1], [0], [0], [1], [0, 0, 1, 1], [], []>} : vector<8x128xf32>, vector<128x128xf32>, vector<8x128xf32> -> vector<8x128xf32>
    %7 = vector.broadcast %3 : vector<1x128xf32> to vector<8x128xf32>
    %8 = arith.addf %6, %7 : vector<8x128xf32>
    %c0_5 = arith.constant 0 : index
    %c0_6 = arith.constant 0 : index
    %9 = vector.load %arg2[%c0_5, %c0_6] : memref<8x128xf32, #tpu.memory_space<vmem>>, vector<8x128xf32>
    %10 = arith.addf %8, %9 : vector<8x128xf32>
    %cst_7 = arith.constant dense<0.000000e+00> : vector<8xf32>
    %11 = vector.multi_reduction <add>, %10, %cst_7 [1] : vector<8x128xf32> to vector<8xf32>
    %12 = vector.shape_cast %11 : vector<8xf32> to vector<8x1xf32>
    %cst_8 = arith.constant 3.125000e-02 : f32
    %13 = vector.broadcast %cst_8 : f32 to vector<8x1xf32>
    %14 = arith.mulf %12, %13 : vector<8x1xf32>
    %15 = vector.broadcast %14 : vector<8x1xf32> to vector<8x128xf32>
    %16 = arith.subf %10, %15 : vector<8x128xf32>
    %17 = tpu.iota {dimensions = array<i32: 1>} : vector<1x128xi32>
    %c32_i32 = arith.constant 32 : i32
    %18 = vector.broadcast %c32_i32 : i32 to vector<1x128xi32>
    %19 = arith.cmpi slt, %17, %18 : vector<1x128xi32>
    %cst_9 = arith.constant 0.000000e+00 : f32
    %20 = vector.shape_cast %19 : vector<1x128xi1> to vector<1x128xi1>
    %21 = vector.broadcast %20 : vector<1x128xi1> to vector<8x128xi1>
    %22 = vector.broadcast %cst_9 : f32 to vector<8x128xf32>
    %23 = arith.select %21, %16, %22 : vector<8x128xi1>, vector<8x128xf32>
    %24 = arith.mulf %23, %23 : vector<8x128xf32>
    %cst_10 = arith.constant dense<0.000000e+00> : vector<8xf32>
    %25 = vector.multi_reduction <add>, %24, %cst_10 [1] : vector<8x128xf32> to vector<8xf32>
    %26 = vector.shape_cast %25 : vector<8xf32> to vector<8x1xf32>
    %cst_11 = arith.constant 3.125000e-02 : f32
    %27 = vector.broadcast %cst_11 : f32 to vector<8x1xf32>
    %28 = arith.mulf %26, %27 : vector<8x1xf32>
    %cst_12 = arith.constant 9.99999996E-13 : f32
    %29 = vector.broadcast %cst_12 : f32 to vector<8x1xf32>
    %30 = arith.addf %28, %29 : vector<8x1xf32>
    %31 = math.rsqrt %30 : vector<8x1xf32>
    %32 = vector.broadcast %31 : vector<8x1xf32> to vector<8x128xf32>
    %33 = arith.mulf %23, %32 : vector<8x128xf32>
    %34 = vector.broadcast %4 : vector<1x128xf32> to vector<8x128xf32>
    %35 = arith.mulf %33, %34 : vector<8x128xf32>
    %36 = vector.broadcast %5 : vector<1x128xf32> to vector<8x128xf32>
    %37 = arith.addf %35, %36 : vector<8x128xf32>
    %c0_13 = arith.constant 0 : index
    %c0_14 = arith.constant 0 : index
    %38 = vector.load %arg5[%c0_13, %c0_14] : memref<8x128xf32, #tpu.memory_space<vmem>>, vector<8x128xf32>
    tpu.vector_store %arg5[%c0_13, %c0_14], %37 {strides = array<i32>} : memref<8x128xf32, #tpu.memory_space<vmem>>, vector<8x128xf32>,
    return
  }
  func.func @transform_0(%arg0: i32) -> (i32, i32) {
    %c0_i32 = arith.constant 0 : i32
    %c0_i32_0 = arith.constant 0 : i32
    return %arg0, %c0_i32 : i32, i32
  }
  func.func @transform_1(%arg0: i32) -> (i32, i32) {
    %c0_i32 = arith.constant 0 : i32
    %c0_i32_0 = arith.constant 0 : i32
    return %arg0, %c0_i32 : i32, i32
  }
  func.func @transform_2(%arg0: i32) -> (i32, i32) {
    %c0_i32 = arith.constant 0 : i32
    %c0_i32_0 = arith.constant 0 : i32
    %c0_i32_1 = arith.constant 0 : i32
    return %c0_i32, %c0_i32_0 : i32, i32
  }
  func.func @transform_3(%arg0: i32) -> (i32, i32) {
    %c0_i32 = arith.constant 0 : i32
    %c0_i32_0 = arith.constant 0 : i32
    %c0_i32_1 = arith.constant 0 : i32
    return %c0_i32, %c0_i32_0 : i32, i32
  }
  func.func @transform_4(%arg0: i32) -> (i32, i32) {
    %c0_i32 = arith.constant 0 : i32
    %c0_i32_0 = arith.constant 0 : i32
    return %arg0, %c0_i32 : i32, i32
  }
}

module attributes {stable_mosaic.version = 11 : i64} {
  func.func @_bert_self_output_kernel(%arg0: i32, %arg1: memref<8x128xf32, #tpu.memory_space<vmem>>, %arg2: memref<8x128xf32, #tpu.memory_space<vmem>>, %arg3: memref<128x128xf32, #tpu.memory_space<vmem>>, %arg4: memref<3x128xf32, #tpu.memory_space<vmem>>, %arg5: memref<8x128xf32, #tpu.memory_space<vmem>>) attributes {dimension_semantics = [#tpu.dimension_semantics<parallel>], iteration_bounds = array<i64: 2>, scalar_prefetch = 0 : i64, scratch_operands = 0 : i64, tpu.core_type = #tpu.core_type<tc>, window_params = [{transform_indices = @transform_0, window_bounds = array<i64: 8, 128>}, {transform_indices = @transform_1, window_bounds = array<i64: 8, 128>}, {pipeline_mode = #tpu.pipeline_mode<synchronous>, transform_indices = @transform_2, window_bounds = array<i64: 128, 128>}, {pipeline_mode = #tpu.pipeline_mode<synchronous>, transform_indices = @transform_3, window_bounds = array<i64: 3, 128>}, {transform_indices = @transform_4, window_bounds = array<i64: 8, 128>}]} {
    %c0 = arith.constant 0 : index
    %c0_0 = arith.constant 0 : index
    %0 = vector.load %arg1[%c0, %c0_0] : memref<8x128xf32, #tpu.memory_space<vmem>>, vector<8x128xf32>
    %c0_1 = arith.constant 0 : index
    %c0_2 = arith.constant 0 : index
    %1 = vector.load %arg3[%c0_1, %c0_2] : memref<128x128xf32, #tpu.memory_space<vmem>>, vector<128x128xf32>
    %c0_3 = arith.constant 0 : index
    %c0_4 = arith.constant 0 : index
    %2 = vector.load %arg4[%c0_3, %c0_4] : memref<3x128xf32, #tpu.memory_space<vmem>>, vector<3x128xf32>
    %3 = vector.extract_strided_slice %2 {offsets = [0, 0], sizes = [1, 128], strides = [1, 1]} : vector<3x128xf32> to vector<1x128xf32>
    %4 = vector.extract_strided_slice %2 {offsets = [1, 0], sizes = [1, 128], strides = [1, 1]} : vector<3x128xf32> to vector<1x128xf32>
    %5 = vector.extract_strided_slice %2 {offsets = [2, 0], sizes = [1, 128], strides = [1, 1]} : vector<3x128xf32> to vector<1x128xf32>
    %cst = arith.constant dense<0.000000e+00> : vector<8x128xf32>
    %6 = tpu.matmul %0, %1, %cst {dimension_numbers = #tpu.dot_dimension_numbers<[1], [0], [0], [1], [0, 0, 1, 1], [], []>} : vector<8x128xf32>, vector<128x128xf32>, vector<8x128xf32> -> vector<8x128xf32>
    %7 = vector.broadcast %3 : vector<1x128xf32> to vector<8x128xf32>
    %8 = arith.addf %6, %7 : vector<8x128xf32>
    %c0_5 = arith.constant 0 : index
    %c0_6 = arith.constant 0 : index
    %9 = vector.load %arg2[%c0_5, %c0_6] : memref<8x128xf32, #tpu.memory_space<vmem>>, vector<8x128xf32>
    %10 = arith.addf %8, %9 : vector<8x128xf32>
    %cst_7 = arith.constant dense<0.000000e+00> : vector<8xf32>
    %11 = vector.multi_reduction <add>, %10, %cst_7 [1] : vector<8x128xf32> to vector<8xf32>
    %12 = vector.shape_cast %11 : vector<8xf32> to vector<8x1xf32>
    %cst_8 = arith.constant 3.125000e-02 : f32
    %13 = vector.broadcast %cst_8 : f32 to vector<8x1xf32>
    %14 = arith.mulf %12, %13 : vector<8x1xf32>
    %15 = vector.broadcast %14 : vector<8x1xf32> to vector<8x128xf32>
    %16 = arith.subf %10, %15 : vector<8x128xf32>
    %17 = tpu.iota {dimensions = array<i32: 1>} : vector<1x128xi32>
    %c32_i32 = arith.constant 32 : i32
    %18 = vector.broadcast %c32_i32 : i32 to vector<1x128xi32>
    %19 = arith.cmpi slt, %17, %18 : vector<1x128xi32>
    %cst_9 = arith.constant 0.000000e+00 : f32
    %20 = vector.shape_cast %19 : vector<1x128xi1> to vector<1x128xi1>
    %21 = vector.broadcast %20 : vector<1x128xi1> to vector<8x128xi1>
    %22 = vector.broadcast %cst_9 : f32 to vector<8x128xf32>
    %23 = arith.select %21, %16, %22 : vector<8x128xi1>, vector<8x128xf32>
    %24 = arith.mulf %23, %23 : vector<8x128xf32>
    %cst_10 = arith.constant dense<0.000000e+00> : vector<8xf32>
    %25 = vector.multi_reduction <add>, %24, %cst_10 [1] : vector<8x128xf32> to vector<8xf32>
    %26 = vector.shape_cast %25 : vector<8xf32> to vector<8x1xf32>
    %cst_11 = arith.constant 3.125000e-02 : f32
    %27 = vector.broadcast %cst_11 : f32 to vector<8x1xf32>
    %28 = arith.mulf %26, %27 : vector<8x1xf32>
    %cst_12 = arith.constant 9.99999996E-13 : f32
    %29 = vector.broadcast %cst_12 : f32 to vector<8x1xf32>
    %30 = arith.addf %28, %29 : vector<8x1xf32>
    %31 = math.rsqrt %30 : vector<8x1xf32>
    %32 = vector.broadcast %31 : vector<8x1xf32> to vector<8x128xf32>
    %33 = arith.mulf %23, %32 : vector<8x128xf32>
    %34 = vector.broadcast %4 : vector<1x128xf32> to vector<8x128xf32>
    %35 = arith.mulf %33, %34 : vector<8x128xf32>
    %36 = vector.broadcast %5 : vector<1x128xf32> to vector<8x128xf32>
    %37 = arith.addf %35, %36 : vector<8x128xf32>
    %c0_13 = arith.constant 0 : index
    %c0_14 = arith.constant 0 : index
    %38 = vector.load %arg5[%c0_13, %c0_14] : memref<8x128xf32, #tpu.memory_space<vmem>>, vector<8x128xf32>
    tpu.vector_store %arg5[%c0_13, %c0_14], %37 {strides = array<i32>} : memref<8x128xf32, #tpu.memory_space<vmem>>, vector<8x128xf32>,
    return
  }
  func.func @transform_0(%arg0: i32) -> (i32, i32) {
    %c0_i32 = arith.constant 0 : i32
    %c0_i32_0 = arith.constant 0 : i32
    return %arg0, %c0_i32 : i32, i32
  }
  func.func @transform_1(%arg0: i32) -> (i32, i32) {
    %c0_i32 = arith.constant 0 : i32
    %c0_i32_0 = arith.constant 0 : i32
    return %arg0, %c0_i32 : i32, i32
  }
  func.func @transform_2(%arg0: i32) -> (i32, i32) {
    %c0_i32 = arith.constant 0 : i32
    %c0_i32_0 = arith.constant 0 : i32
    %c0_i32_1 = arith.constant 0 : i32
    return %c0_i32, %c0_i32_0 : i32, i32
  }
  func.func @transform_3(%arg0: i32) -> (i32, i32) {
    %c0_i32 = arith.constant 0 : i32
    %c0_i32_0 = arith.constant 0 : i32
    %c0_i32_1 = arith.constant 0 : i32
    return %c0_i32, %c0_i32_0 : i32, i32
  }
  func.func @transform_4(%arg0: i32) -> (i32, i32) {
    %c0_i32 = arith.constant 0 : i32
    %c0_i32_0 = arith.constant 0 : i32
    return %arg0, %c0_i32 : i32, i32
  }
}

</mosaic_0001>

<llo_original>
// kernel: tpu_custom_call.1
$region0: #{tpu_custom_call.1}
  #allocation0 [shape = 'u32[]', space=smem, size = 0x4, offset = 0x4, fixed_abs, tag = 'smem constant byte address 0x4 - core index']
  #allocation1 [shape = 'u32[144,128]{1,0:T(1,128)}', space=vmem, size = 0x12000, scoped, tag = 'internal scratch']
  %s0 = inlined_call_operand.hbm [shape: f32[16,128], index: 0, kind: input, shape index: {}]
  %s1 = inlined_call_operand.hbm [shape: f32[16,128], index: 1, kind: input, shape index: {}]
  %s2 = inlined_call_operand.hbm [shape: f32[128,128], index: 2, kind: input, shape index: {}]
  %s3 = inlined_call_operand.vmem [shape: f32[3,128], index: 3, kind: input, shape index: {}]
  %s4 = inlined_call_operand.hbm [shape: f32[16,128], index: 4, kind: output, shape index: {}]
  %s5 = sld [smem:[#allocation0]]
  $region61: #{tpu_custom_call.1} parent=0
    _
  %s7 = ssub.s32 1, %s5
  %s8 = scalar_select 0, %s7, %s5
  $region1: #{tpu_custom_call.1} parent=0
    #allocation2 [shape = 'u8[8192]{0}', space=vmem, size = 0x2000, scoped, tag = 'input window, operand 0']
    #allocation3 [shape = 's32[2]{0}', space=sflag, size = 0x8, scoped, tag = 'scoped memory for tpu_custom_call.1']
    #allocation4 [shape = 's32[2]{0}', space=sflag, size = 0x8, scoped, tag = 'scoped memory for tpu_custom_call.1']
    #allocation5 [shape = 'u8[8192]{0}', space=vmem, size = 0x2000, scoped, tag = 'input window, operand 1']
    #allocation6 [shape = 's32[2]{0}', space=sflag, size = 0x8, scoped, tag = 'scoped memory for tpu_custom_call.1']
    #allocation7 [shape = 'u8[65536]{0}', space=vmem, size = 0x10000, scoped, tag = 'input window, operand 2, single buffered']
    #allocation8 [shape = 'u8[8192]{0}', space=vmem, size = 0x2000, scoped, tag = 'output window, operand 0']
    %9 = vsyncpa [#allocation3], 0
    %s10 = scalar_lea.sflag [#allocation3], 1
    %11 = vsyncpa %s10, 0
    %12 = vsyncpa [#allocation6], 0
    %s13 = scalar_lea.sflag [#allocation6], 1
    %14 = vsyncpa %s13, 0
    %15 = vsyncpa [#allocation4], 0
    %s16 = scalar_lea.sflag [#allocation4], 1
    %17 = vsyncpa %s16, 0
    loop: start=0, step=1, limit=4
    $region2: #{tpu_custom_call.1} parent=1 // loop_pre_header
      _
    $region3: #{tpu_custom_call.1} parent=1 // loop_header
      %s19 = sphi 0, %s23
      %p20 = scmp.ge.s32.totalorder %s19, 4
      %s29 = sphi 0, %s31
      %s32 = sphi 0, %s29
      %s33 = sphi 0, %s32
      %s49 = sphi 0, %s33
      %s55 = sphi 0, %s57
      %s58 = sphi 0, %s55
      %s59 = sphi 0, %s58
      %s75 = sphi 0, %s59
      %s79 = sphi 0, %s79
      %s81 = sphi 0, %s79
      %s82 = sphi 0, %s81
      %s96 = sphi 0, %s82
      %s100 = sphi 0, %s100
      %s102 = sphi 0, %s100
      %s103 = sphi 0, %s102
      %s117 = sphi 0, %s103
      %s123 = sphi 0, %s125
      %s126 = sphi 0, %s123
      %s127 = sphi 0, %s126
      %s143 = sphi 0, %s127
    $region4: #{tpu_custom_call.1} parent=1 // loop_header_branch
      %22 = sbr.rel (%p20) target = $region8
    $region5: #{tpu_custom_call.1} parent=1 // loop_body
      %s24 = ssub.s32 %s19, 1
      %s25 = ssub.s32 %s19, 2
      %s26 = sadd.s32 %s19, 1
      %s27 = ssub.s32 %s19, %s26
      %p28 = scmp.eq.s32.totalorder %s27, 0
      %s30 = sadd.s32 %s29, 1
      %s31 = scalar_select %p28, %s29, %s30
      %p34 = pneg %p28
      %p35 = scmp.eq.s32.totalorder %s19, 1
      %p36 = por %p34, %p35
      %p37 = scmp.ne.s32.totalorder %s29, %s32
      %p38 = scmp.eq.s32.totalorder %s19, 0
      %p39 = por %p37, %p38
      %p40 = scmp.ne.s32.totalorder %s29, %s32
      %p41 = scmp.eq.s32.totalorder %s24, 1
      %p42 = por %p40, %p41
      %p43 = scmp.ne.s32.totalorder %s32, %s33
      %p44 = scmp.eq.s32.totalorder %s24, 0
      %p45 = por %p43, %p44
      %p46 = scmp.ne.s32.totalorder %s32, %s33
      %p47 = scmp.eq.s32.totalorder %s25, 1
      %p48 = por %p46, %p47
      %p50 = scmp.ne.s32.totalorder %s33, %s49
      %p51 = scmp.eq.s32.totalorder %s25, 0
      %p52 = por %p50, %p51
      %s53 = ssub.s32 %s19, %s26
      %p54 = scmp.eq.s32.totalorder %s53, 0
      %s56 = sadd.s32 %s55, 1
      %s57 = scalar_select %p54, %s55, %s56
      %p60 = pneg %p54
      %p61 = scmp.eq.s32.totalorder %s19, 1
      %p62 = por %p60, %p61
      %p63 = scmp.ne.s32.totalorder %s55, %s58
      %p64 = scmp.eq.s32.totalorder %s19, 0
      %p65 = por %p63, %p64
      %p66 = scmp.ne.s32.totalorder %s55, %s58
      %p67 = scmp.eq.s32.totalorder %s24, 1
      %p68 = por %p66, %p67
      %p69 = scmp.ne.s32.totalorder %s58, %s59
      %p70 = scmp.eq.s32.totalorder %s24, 0
      %p71 = por %p69, %p70
      %p72 = scmp.ne.s32.totalorder %s58, %s59
      %p73 = scmp.eq.s32.totalorder %s25, 1
      %p74 = por %p72, %p73
      %p76 = scmp.ne.s32.totalorder %s59, %s75
      %p77 = scmp.eq.s32.totalorder %s25, 0
      %p78 = por %p76, %p77
      %s80 = sadd.s32 %s79, 1
      %p83 = scmp.eq.s32.totalorder %s19, 1
      %p84 = scmp.ne.s32.totalorder %s79, %s81
      %p85 = scmp.eq.s32.totalorder %s19, 0
      %p86 = por %p84, %p85
      %p87 = scmp.ne.s32.totalorder %s79, %s81
      %p88 = scmp.eq.s32.totalorder %s24, 1
      %p89 = por %p87, %p88
      %p90 = scmp.ne.s32.totalorder %s81, %s82
      %p91 = scmp.eq.s32.totalorder %s24, 0
      %p92 = por %p90, %p91
      %p93 = scmp.ne.s32.totalorder %s81, %s82
      %p94 = scmp.eq.s32.totalorder %s25, 1
      %p95 = por %p93, %p94
      %p97 = scmp.ne.s32.totalorder %s82, %s96
      %p98 = scmp.eq.s32.totalorder %s25, 0
      %p99 = por %p97, %p98
      %s101 = sadd.s32 %s100, 1
      %p104 = scmp.eq.s32.totalorder %s19, 1
      %p105 = scmp.ne.s32.totalorder %s100, %s102
      %p106 = scmp.eq.s32.totalorder %s19, 0
      %p107 = por %p105, %p106
      %p108 = scmp.ne.s32.totalorder %s100, %s102
      %p109 = scmp.eq.s32.totalorder %s24, 1
      %p110 = por %p108, %p109
      %p111 = scmp.ne.s32.totalorder %s102, %s103
      %p112 = scmp.eq.s32.totalorder %s24, 0
      %p113 = por %p111, %p112
      %p114 = scmp.ne.s32.totalorder %s102, %s103
      %p115 = scmp.eq.s32.totalorder %s25, 1
      %p116 = por %p114, %p115
      %p118 = scmp.ne.s32.totalorder %s103, %s117
      %p119 = scmp.eq.s32.totalorder %s25, 0
      %p120 = por %p118, %p119
      %s121 = ssub.s32 %s19, %s26
      %p122 = scmp.eq.s32.totalorder %s121, 0
      %s124 = sadd.s32 %s123, 1
      %s125 = scalar_select %p122, %s123, %s124
      %p128 = pneg %p122
      %p129 = scmp.eq.s32.totalorder %s19, 1
      %p130 = por %p128, %p129
      %p131 = scmp.ne.s32.totalorder %s123, %s126
      %p132 = scmp.eq.s32.totalorder %s19, 0
      %p133 = por %p131, %p132
      %p134 = scmp.ne.s32.totalorder %s123, %s126
      %p135 = scmp.eq.s32.totalorder %s24, 1
      %p136 = por %p134, %p135
      %p137 = scmp.ne.s32.totalorder %s126, %s127
      %p138 = scmp.eq.s32.totalorder %s24, 0
      %p139 = por %p137, %p138
      %p140 = scmp.ne.s32.totalorder %s126, %s127
      %p141 = scmp.eq.s32.totalorder %s25, 1
      %p142 = por %p140, %p141
      %p144 = scmp.ne.s32.totalorder %s127, %s143
      %p145 = scmp.eq.s32.totalorder %s25, 0
      %p146 = por %p144, %p145
      %p147 = scmp.le.s32.totalorder 1, %s19
      %p148 = scmp.lt.s32.totalorder %s19, 3
      %p149 = pnand %p147, %p148
      %p150 = pneg %p149
      // Predicated region
      $region9: #{tpu_custom_call.1} parent=5 // pred_check
        _
      $region10: #{tpu_custom_call.1} parent=5 // pred_check_branch
        %152 = sbr.rel (%p149) target = $region12
      $region11: #{tpu_custom_call.1} parent=5 // pred_region
        %s153 = ssub.s32 %s19, 1
        // Predicated region
        $region13: #{tpu_custom_call.1} parent=11 // pred_check
          %p154 = pneg %p92
        $region14: #{tpu_custom_call.1} parent=11 // pred_check_branch
          %156 = sbr.rel (%p154) target = $region16
        $region15: #{tpu_custom_call.1} parent=11 // pred_region
          %s158 = ssub.s32 2048, 2048
          %159 = vsyncadd [#allocation6], %s158
          %s160 = sshll.u32 [#allocation7], 4
          %s161 = int_to_ptr.vmem [resolvable:$true] %s160
          %166 = dma.hbm_to_vmem [thread:$0]  %s2, 2048, %s161, [#allocation6], 128, 128, 8
        $region16: #{tpu_custom_call.1} parent=11 // pred_fallthru
          _
        // Predicated region
        $region17: #{tpu_custom_call.1} parent=11 // pred_check
          %p167 = pneg %p113
        $region18: #{tpu_custom_call.1} parent=11 // pred_check_branch
          %169 = sbr.rel (%p167) target = $region20
        $region19: #{tpu_custom_call.1} parent=11 // pred_region
          _
        $region20: #{tpu_custom_call.1} parent=11 // pred_fallthru
          _
      $region12: #{tpu_custom_call.1} parent=5 // pred_fallthru
        _
      %p170 = scmp.lt.s32.totalorder %s19, 2
      // Predicated region
      $region21: #{tpu_custom_call.1} parent=5 // pred_check
        %p171 = pneg %p170
      $region22: #{tpu_custom_call.1} parent=5 // pred_check_branch
        %173 = sbr.rel (%p171) target = $region24
      $region23: #{tpu_custom_call.1} parent=5 // pred_region
        // Predicated region
        $region25: #{tpu_custom_call.1} parent=23 // pred_check
          %p174 = pneg %p39
        $region26: #{tpu_custom_call.1} parent=23 // pred_check_branch
          %176 = sbr.rel (%p174) target = $region28
        $region27: #{tpu_custom_call.1} parent=23 // pred_region
          %s177 = sand.u32 %s29, 1
          %s178 = scalar_lea.sflag [#allocation3], %s177
          %s179 = sand.u32 %s29, 1
          %s180 = smul.addr %s179, 8
          %s181 = scalar_lea.vmem [#allocation2], %s180
          %s183 = ssub.s32 128, 128
          %184 = vsyncadd %s178, %s183
          %s185 = smul.addr %s19, 128
          %s186 = scalar_lea.hbm %s0, %s185
          %s188 = sshll.u32 %s181, 4
          %s189 = int_to_ptr.vmem [resolvable:$true] %s188
          %191 = dma.hbm_to_vmem [thread:$0]  %s186, 128, %s189, %s178
        $region28: #{tpu_custom_call.1} parent=23 // pred_fallthru
          _
        // Predicated region
        $region29: #{tpu_custom_call.1} parent=23 // pred_check
          %p192 = pneg %p65
        $region30: #{tpu_custom_call.1} parent=23 // pred_check_branch
          %194 = sbr.rel (%p192) target = $region32
        $region31: #{tpu_custom_call.1} parent=23 // pred_region
          %s195 = sand.u32 %s19, 1
          %s196 = scalar_lea.sflag [#allocation6], %s195
          %s197 = sand.u32 %s55, 1
          %s198 = smul.addr %s197, 8
          %s199 = scalar_lea.vmem [#allocation5], %s198
          %s201 = ssub.s32 128, 128
          %202 = vsyncadd %s196, %s201
          %s203 = smul.addr %s19, 128
          %s204 = scalar_lea.hbm %s1, %s203
          %s206 = sshll.u32 %s199, 4
          %s207 = int_to_ptr.vmem [resolvable:$true] %s206
          %209 = dma.hbm_to_vmem [thread:$0]  %s204, 128, %s207, %s196
        $region32: #{tpu_custom_call.1} parent=23 // pred_fallthru
          _
      $region24: #{tpu_custom_call.1} parent=5 // pred_fallthru
        _
      %p210 = scmp.le.s32.totalorder 1, %s19
      %p211 = scmp.lt.s32.totalorder %s19, 3
      %p212 = pnand %p210, %p211
      %p213 = pneg %p212
      // Predicated region
      $region33: #{tpu_custom_call.1} parent=5 // pred_check
        _
      $region34: #{tpu_custom_call.1} parent=5 // pred_check_branch
        %215 = sbr.rel (%p212) target = $region36
      $region35: #{tpu_custom_call.1} parent=5 // pred_region
        %s216 = ssub.s32 %s19, 1
        %s217 = sand.u32 %s32, 1
        %s218 = scalar_lea.sflag [#allocation3], %s217
        %s219 = sand.u32 %s32, 1
        %s220 = smul.addr %s219, 8
        %s221 = scalar_lea.vmem [#allocation2], %s220
        // Predicated region
        $region37: #{tpu_custom_call.1} parent=35 // pred_check
          %p222 = pneg %p45
        $region38: #{tpu_custom_call.1} parent=35 // pred_check_branch
          %224 = sbr.rel (%p222) target = $region40
        $region39: #{tpu_custom_call.1} parent=35 // pred_region
          %225 = dma.done %s218, 128
        $region40: #{tpu_custom_call.1} parent=35 // pred_fallthru
          _
        %s226 = sand.u32 %s24, 1
        %s227 = scalar_lea.sflag [#allocation6], %s226
        %s228 = sand.u32 %s58, 1
        %s229 = smul.addr %s228, 8
        %s230 = scalar_lea.vmem [#allocation5], %s229
        // Predicated region
        $region41: #{tpu_custom_call.1} parent=35 // pred_check
          %p231 = pneg %p71
        $region42: #{tpu_custom_call.1} parent=35 // pred_check_branch
          %233 = sbr.rel (%p231) target = $region44
        $region43: #{tpu_custom_call.1} parent=35 // pred_region
          %234 = dma.done %s227, 128
        $region44: #{tpu_custom_call.1} parent=35 // pred_fallthru
          _
        // Predicated region
        $region45: #{tpu_custom_call.1} parent=35 // pred_check
          %p235 = pneg %p92
        $region46: #{tpu_custom_call.1} parent=35 // pred_check_branch
          %237 = sbr.rel (%p235) target = $region48
        $region47: #{tpu_custom_call.1} parent=35 // pred_region
          %238 = dma.done [#allocation6], 2048
        $region48: #{tpu_custom_call.1} parent=35 // pred_fallthru
          _
        %s239 = sand.u32 %s32, 1
        %s240 = scalar_lea.sflag [#allocation3], %s239
        %s241 = sand.u32 %s32, 1
        %s242 = smul.addr %s241, 8
        %s243 = scalar_lea.vmem [#allocation2], %s242
        %p244 = pneg %p45
        %p245 = pneg %p42
        %s246 = sand.u32 %s24, 1
        %s247 = scalar_lea.sflag [#allocation6], %s246
        %s248 = sand.u32 %s58, 1
        %s249 = smul.addr %s248, 8
        %s250 = scalar_lea.vmem [#allocation5], %s249
        %p251 = pneg %p71
        %p252 = pneg %p68
        %p253 = pneg %p92
        %p254 = pneg %p89
        %p255 = pneg %p113
        %p256 = pneg %p110
        %p257 = pneg %p139
        %p258 = pneg %p136
        %s259 = sand.u32 %s126, 1
        %s260 = scalar_lea.sflag [#allocation4], %s259
        %s261 = sand.u32 %s126, 1
        %s262 = smul.addr %s261, 8
        %s263 = scalar_lea.vmem [#allocation8], %s262
        %v264 = vld [vmem:[%s221] sm:$0xff]
        %v265 = vld [vmem:[#allocation7] sm:$0xff]
        %v266 = vld [vmem:[#allocation7 + $0x8] sm:$0xff]
        %v267 = vld [vmem:[#allocation7 + $0x10] sm:$0xff]
        %v268 = vld [vmem:[#allocation7 + $0x18] sm:$0xff]
        %v269 = vld [vmem:[#allocation7 + $0x20] sm:$0xff]
        %v270 = vld [vmem:[#allocation7 + $0x28] sm:$0xff]
        %v271 = vld [vmem:[#allocation7 + $0x30] sm:$0xff]
        %v272 = vld [vmem:[#allocation7 + $0x38] sm:$0xff]
        %v273 = vld [vmem:[#allocation7 + $0x40] sm:$0xff]
        %v274 = vld [vmem:[#allocation7 + $0x48] sm:$0xff]
        %v275 = vld [vmem:[#allocation7 + $0x50] sm:$0xff]
        %v276 = vld [vmem:[#allocation7 + $0x58] sm:$0xff]
        %v277 = vld [vmem:[#allocation7 + $0x60] sm:$0xff]
        %v278 = vld [vmem:[#allocation7 + $0x68] sm:$0xff]
        %v279 = vld [vmem:[#allocation7 + $0x70] sm:$0xff]
        %v280 = vld [vmem:[#allocation7 + $0x78] sm:$0xff]
        %v281 = vld [vmem:[%s3] sm:$0x7]
        %v282 = vlaneseq
        %v283 = vshrl.u32 %v282, 7
        %v284 = vsub.s32 0, %v283
        %v285 = vrot.slane %v281, %v284
        %286 = vmatprep.subr.mxu0 0.0
        %287 = vmatpush1.msra.mxu0 %v280
        %288 = vmatprep.subr.mxu0 0.0
        %289 = vmatpush1.msra.mxu0 %v279
        %290 = vmatprep.subr.mxu0 0.0
        %291 = vmatpush1.msra.mxu0 %v278
        %292 = vmatprep.subr.mxu0 0.0
        %293 = vmatpush1.msra.mxu0 %v277
        %294 = vmatprep.subr.mxu0 0.0
        %295 = vmatpush1.msra.mxu0 %v276
        %296 = vmatprep.subr.mxu0 0.0
        %297 = vmatpush1.msra.mxu0 %v275
        %298 = vmatprep.subr.mxu0 0.0
        %299 = vmatpush1.msra.mxu0 %v274
        %300 = vmatprep.subr.mxu0 0.0
        %301 = vmatpush1.msra.mxu0 %v273
        %302 = vmatprep.subr.mxu0 0.0
        %303 = vmatpush1.msra.mxu0 %v272
        %304 = vmatprep.subr.mxu0 0.0
        %305 = vmatpush1.msra.mxu0 %v271
        %306 = vmatprep.subr.mxu0 0.0
        %307 = vmatpush1.msra.mxu0 %v270
        %308 = vmatprep.subr.mxu0 0.0
        %309 = vmatpush1.msra.mxu0 %v269
        %310 = vmatprep.subr.mxu0 0.0
        %311 = vmatpush1.msra.mxu0 %v268
        %312 = vmatprep.subr.mxu0 0.0
        %313 = vmatpush1.msra.mxu0 %v267
        %314 = vmatprep.subr.mxu0 0.0
        %315 = vmatpush1.msra.mxu0 %v266
        %316 = vmatprep.subr.mxu0 0.0
        %317 = vmatpush1.msra.mxu0 %v265
        %318 = vmatprep.subr.mxu0 0.0
        %319 = vmatpush2.msra.mxu0 0.0
        %320 = vmatprep.subr.mxu0 0.0
        %321 = vmatpush2.msra.mxu0 0.0
        %322 = vmatprep.subr.mxu0 0.0
        %323 = vmatpush2.msra.mxu0 0.0
        %324 = vmatprep.subr.mxu0 0.0
        %325 = vmatpush2.msra.mxu0 0.0
        %326 = vmatprep.subr.mxu0 0.0
        %327 = vmatpush2.msra.mxu0 0.0
        %328 = vmatprep.subr.mxu0 0.0
        %329 = vmatpush2.msra.mxu0 0.0
        %330 = vmatprep.subr.mxu0 0.0
        %331 = vmatpush2.msra.mxu0 0.0
        %332 = vmatprep.subr.mxu0 0.0
        %333 = vmatpush2.msra.mxu0 0.0
        %334 = vmatprep.subr.mxu0 0.0
        %335 = vmatpush2.msra.mxu0 0.0
        %336 = vmatprep.subr.mxu0 0.0
        %337 = vmatpush2.msra.mxu0 0.0
        %338 = vmatprep.subr.mxu0 0.0
        %339 = vmatpush2.msra.mxu0 0.0
        %340 = vmatprep.subr.mxu0 0.0
        %341 = vmatpush2.msra.mxu0 0.0
        %342 = vmatprep.subr.mxu0 0.0
        %343 = vmatpush2.msra.mxu0 0.0
        %344 = vmatprep.subr.mxu0 0.0
        %345 = vmatpush2.msra.mxu0 0.0
        %346 = vmatprep.subr.mxu0 0.0
        %347 = vmatpush2.msra.mxu0 0.0
        %348 = vmatprep.subr.mxu0 0.0
        %349 = vmatpush2.msra.mxu0 0.0
        %350 = vmatprep.mubr.f32.mxu0 0.0
        %351 = vmatmul.mubr.f32.gmra.mxu0 %v264
        %v352 = vpop.f32.mrf.mxu0
        %v353 = vadd.f32 %v285, %v352
        %v354 = vpop.f32.mrf.mxu0
        %355 = vdwg.mxu0
        %v356 = vld [vmem:[%s230] sm:$0xff]
        %v357 = vadd.f32 %v353, %v356
        %358 = vadd.xlane.f32.xlu0 %v357
        %v359 = vpop.xlane.xlu0 %358
        %v360 = vmul.f32 %v359, 0.03125
        %v361 = vsub.f32 %v357, %v360
        %v362 = vlaneseq
        %v363 = vand.u32 %v362, 127
        %vm364 = vcmp.lt.s32.totalorder %v363, 32
        %v365 = vsel %vm364, 1, 0
        %vm366 = vcmp.eq.s32.totalorder %v365, 1
        %v367 = vsel %vm366, %v361, 0.0
        %v368 = vmul.f32 %v367, %v367
        %369 = vadd.xlane.f32.xlu0 %v368
        %v370 = vpop.xlane.xlu0 %369
        %v371 = vmul.f32 %v370, 0.03125
        %v372 = vadd.f32 %v371, 1e-12
        %v373 = vrsqrt.pop %v372
        %v374 = vmul.f32 %v367, %v373
        %v375 = vlaneseq
        %v376 = vshrl.u32 %v375, 7
        %v377 = vsub.s32 1, %v376
        %v378 = vrot.slane %v281, %v377
        %v379 = vmul.f32 %v374, %v378
        %v380 = vlaneseq
        %v381 = vshrl.u32 %v380, 7
        %v382 = vsub.s32 2, %v381
        %v383 = vrot.slane %v281, %v382
        %v384 = vadd.f32 %v379, %v383
        %385 = vst [vmem:[%s263] sm:$0xff] %v384
        %s386 = sand.u32 %s126, 1
        %s387 = scalar_lea.sflag [#allocation4], %s386
        %s388 = sand.u32 %s126, 1
        %s389 = smul.addr %s388, 8
        %s390 = scalar_lea.vmem [#allocation8], %s389
        // Predicated region
        $region49: #{tpu_custom_call.1} parent=35 // pred_check
          %p391 = pneg %p136
        $region50: #{tpu_custom_call.1} parent=35 // pred_check_branch
          %393 = sbr.rel (%p391) target = $region52
        $region51: #{tpu_custom_call.1} parent=35 // pred_region
          %s395 = ssub.s32 128, 128
          %396 = vsyncadd %s387, %s395
          %s397 = smul.addr %s24, 128
          %s398 = scalar_lea.hbm %s4, %s397
          %s400 = sshll.u32 %s390, 4
          %s401 = int_to_ptr.vmem [resolvable:$true] %s400
          %403 = dma.vmem_to_hbm [thread:$0]  %s401, 128, %s398, %s387
        $region52: #{tpu_custom_call.1} parent=35 // pred_fallthru
          _
      $region36: #{tpu_custom_call.1} parent=5 // pred_fallthru
        _
      %p404 = scmp.le.s32.totalorder 2, %s19
      // Predicated region
      $region53: #{tpu_custom_call.1} parent=5 // pred_check
        %p405 = pneg %p404
      $region54: #{tpu_custom_call.1} parent=5 // pred_check_branch
        %407 = sbr.rel (%p405) target = $region56
      $region55: #{tpu_custom_call.1} parent=5 // pred_region
        %s408 = ssub.s32 %s19, 2
        // Predicated region
        $region57: #{tpu_custom_call.1} parent=55 // pred_check
          %p409 = pneg %p142
        $region58: #{tpu_custom_call.1} parent=55 // pred_check_branch
          %411 = sbr.rel (%p409) target = $region60
        $region59: #{tpu_custom_call.1} parent=55 // pred_region
          %s412 = sand.u32 %s127, 1
          %s413 = scalar_lea.sflag [#allocation4], %s412
          %s414 = sand.u32 %s127, 1
          %s415 = smul.addr %s414, 8
          %s416 = scalar_lea.vmem [#allocation8], %s415
          %417 = dma.done %s413, 128
        $region60: #{tpu_custom_call.1} parent=55 // pred_fallthru
          _
      $region56: #{tpu_custom_call.1} parent=5 // pred_fallthru
        _
    $region6: #{tpu_custom_call.1} parent=1 // loop_footer
      %s23 = sadd.s32 1, %s19
    $region7: #{tpu_custom_call.1} parent=1 // loop_footer_branch
      %18 = sbr.rel target = $region3
    $region8: #{tpu_custom_call.1} parent=1 // loop_exit
      _
    %418 = vsyncpa [#allocation3], 1
    %s419 = scalar_lea.sflag [#allocation3], 1
    %420 = vsyncpa %s419, 1
    %421 = vsyncpa [#allocation6], 1
    %s422 = scalar_lea.sflag [#allocation6], 1
    %423 = vsyncpa %s422, 1
    %424 = vsyncpa [#allocation4], 1
    %s425 = scalar_lea.sflag [#allocation4], 1
    %426 = vsyncpa %s425, 1

// kernel: tpu_custom_call.1
$region0: #{tpu_custom_call.1}
  #allocation0 [shape = 'u32[]', space=smem, size = 0x4, offset = 0x4, fixed_abs, tag = 'smem constant byte address 0x4 - core index']
  #allocation1 [shape = 'u32[144,128]{1,0:T(1,128)}', space=vmem, size = 0x12000, scoped, tag = 'internal scratch']
  %s0 = inlined_call_operand.hbm [shape: f32[16,128], index: 0, kind: input, shape index: {}]
  %s1 = inlined_call_operand.hbm [shape: f32[16,128], index: 1, kind: input, shape index: {}]
  %s2 = inlined_call_operand.hbm [shape: f32[128,128], index: 2, kind: input, shape index: {}]
  %s3 = inlined_call_operand.vmem [shape: f32[3,128], index: 3, kind: input, shape index: {}]
  %s4 = inlined_call_operand.hbm [shape: f32[16,128], index: 4, kind: output, shape index: {}]
  %s5 = sld [smem:[#allocation0]]
  $region61: #{tpu_custom_call.1} parent=0
    _
  %s7 = ssub.s32 1, %s5
  %s8 = scalar_select 0, %s7, %s5
  $region1: #{tpu_custom_call.1} parent=0
    #allocation2 [shape = 'u8[8192]{0}', space=vmem, size = 0x2000, scoped, tag = 'input window, operand 0']
    #allocation3 [shape = 's32[2]{0}', space=sflag, size = 0x8, scoped, tag = 'scoped memory for tpu_custom_call.1']
    #allocation4 [shape = 's32[2]{0}', space=sflag, size = 0x8, scoped, tag = 'scoped memory for tpu_custom_call.1']
    #allocation5 [shape = 'u8[8192]{0}', space=vmem, size = 0x2000, scoped, tag = 'input window, operand 1']
    #allocation6 [shape = 's32[2]{0}', space=sflag, size = 0x8, scoped, tag = 'scoped memory for tpu_custom_call.1']
    #allocation7 [shape = 'u8[65536]{0}', space=vmem, size = 0x10000, scoped, tag = 'input window, operand 2, single buffered']
    #allocation8 [shape = 'u8[8192]{0}', space=vmem, size = 0x2000, scoped, tag = 'output window, operand 0']
    %9 = vsyncpa [#allocation3], 0
    %s10 = scalar_lea.sflag [#allocation3], 1
    %11 = vsyncpa %s10, 0
    %12 = vsyncpa [#allocation6], 0
    %s13 = scalar_lea.sflag [#allocation6], 1
    %14 = vsyncpa %s13, 0
    %15 = vsyncpa [#allocation4], 0
    %s16 = scalar_lea.sflag [#allocation4], 1
    %17 = vsyncpa %s16, 0
    loop: start=0, step=1, limit=4
    $region2: #{tpu_custom_call.1} parent=1 // loop_pre_header
      _
    $region3: #{tpu_custom_call.1} parent=1 // loop_header
      %s19 = sphi 0, %s23
      %p20 = scmp.ge.s32.totalorder %s19, 4
      %s29 = sphi 0, %s31
      %s32 = sphi 0, %s29
      %s33 = sphi 0, %s32
      %s49 = sphi 0, %s33
      %s55 = sphi 0, %s57
      %s58 = sphi 0, %s55
      %s59 = sphi 0, %s58
      %s75 = sphi 0, %s59
      %s79 = sphi 0, %s79
      %s81 = sphi 0, %s79
      %s82 = sphi 0, %s81
      %s96 = sphi 0, %s82
      %s100 = sphi 0, %s100
      %s102 = sphi 0, %s100
      %s103 = sphi 0, %s102
      %s117 = sphi 0, %s103
      %s123 = sphi 0, %s125
      %s126 = sphi 0, %s123
      %s127 = sphi 0, %s126
      %s143 = sphi 0, %s127
    $region4: #{tpu_custom_call.1} parent=1 // loop_header_branch
      %22 = sbr.rel (%p20) target = $region8
    $region5: #{tpu_custom_call.1} parent=1 // loop_body
      %s24 = ssub.s32 %s19, 1
      %s25 = ssub.s32 %s19, 2
      %s26 = sadd.s32 %s19, 1
      %s27 = ssub.s32 %s19, %s26
      %p28 = scmp.eq.s32.totalorder %s27, 0
      %s30 = sadd.s32 %s29, 1
      %s31 = scalar_select %p28, %s29, %s30
      %p34 = pneg %p28
      %p35 = scmp.eq.s32.totalorder %s19, 1
      %p36 = por %p34, %p35
      %p37 = scmp.ne.s32.totalorder %s29, %s32
      %p38 = scmp.eq.s32.totalorder %s19, 0
      %p39 = por %p37, %p38
      %p40 = scmp.ne.s32.totalorder %s29, %s32
      %p41 = scmp.eq.s32.totalorder %s24, 1
      %p42 = por %p40, %p41
      %p43 = scmp.ne.s32.totalorder %s32, %s33
      %p44 = scmp.eq.s32.totalorder %s24, 0
      %p45 = por %p43, %p44
      %p46 = scmp.ne.s32.totalorder %s32, %s33
      %p47 = scmp.eq.s32.totalorder %s25, 1
      %p48 = por %p46, %p47
      %p50 = scmp.ne.s32.totalorder %s33, %s49
      %p51 = scmp.eq.s32.totalorder %s25, 0
      %p52 = por %p50, %p51
      %s53 = ssub.s32 %s19, %s26
      %p54 = scmp.eq.s32.totalorder %s53, 0
      %s56 = sadd.s32 %s55, 1
      %s57 = scalar_select %p54, %s55, %s56
      %p60 = pneg %p54
      %p61 = scmp.eq.s32.totalorder %s19, 1
      %p62 = por %p60, %p61
      %p63 = scmp.ne.s32.totalorder %s55, %s58
      %p64 = scmp.eq.s32.totalorder %s19, 0
      %p65 = por %p63, %p64
      %p66 = scmp.ne.s32.totalorder %s55, %s58
      %p67 = scmp.eq.s32.totalorder %s24, 1
      %p68 = por %p66, %p67
      %p69 = scmp.ne.s32.totalorder %s58, %s59
      %p70 = scmp.eq.s32.totalorder %s24, 0
      %p71 = por %p69, %p70
      %p72 = scmp.ne.s32.totalorder %s58, %s59
      %p73 = scmp.eq.s32.totalorder %s25, 1
      %p74 = por %p72, %p73
      %p76 = scmp.ne.s32.totalorder %s59, %s75
      %p77 = scmp.eq.s32.totalorder %s25, 0
      %p78 = por %p76, %p77
      %s80 = sadd.s32 %s79, 1
      %p83 = scmp.eq.s32.totalorder %s19, 1
      %p84 = scmp.ne.s32.totalorder %s79, %s81
      %p85 = scmp.eq.s32.totalorder %s19, 0
      %p86 = por %p84, %p85
      %p87 = scmp.ne.s32.totalorder %s79, %s81
      %p88 = scmp.eq.s32.totalorder %s24, 1
      %p89 = por %p87, %p88
      %p90 = scmp.ne.s32.totalorder %s81, %s82
      %p91 = scmp.eq.s32.totalorder %s24, 0
      %p92 = por %p90, %p91
      %p93 = scmp.ne.s32.totalorder %s81, %s82
      %p94 = scmp.eq.s32.totalorder %s25, 1
      %p95 = por %p93, %p94
      %p97 = scmp.ne.s32.totalorder %s82, %s96
      %p98 = scmp.eq.s32.totalorder %s25, 0
      %p99 = por %p97, %p98
      %s101 = sadd.s32 %s100, 1
      %p104 = scmp.eq.s32.totalorder %s19, 1
      %p105 = scmp.ne.s32.totalorder %s100, %s102
      %p106 = scmp.eq.s32.totalorder %s19, 0
      %p107 = por %p105, %p106
      %p108 = scmp.ne.s32.totalorder %s100, %s102
      %p109 = scmp.eq.s32.totalorder %s24, 1
      %p110 = por %p108, %p109
      %p111 = scmp.ne.s32.totalorder %s102, %s103
      %p112 = scmp.eq.s32.totalorder %s24, 0
      %p113 = por %p111, %p112
      %p114 = scmp.ne.s32.totalorder %s102, %s103
      %p115 = scmp.eq.s32.totalorder %s25, 1
      %p116 = por %p114, %p115
      %p118 = scmp.ne.s32.totalorder %s103, %s117
      %p119 = scmp.eq.s32.totalorder %s25, 0
      %p120 = por %p118, %p119
      %s121 = ssub.s32 %s19, %s26
      %p122 = scmp.eq.s32.totalorder %s121, 0
      %s124 = sadd.s32 %s123, 1
      %s125 = scalar_select %p122, %s123, %s124
      %p128 = pneg %p122
      %p129 = scmp.eq.s32.totalorder %s19, 1
      %p130 = por %p128, %p129
      %p131 = scmp.ne.s32.totalorder %s123, %s126
      %p132 = scmp.eq.s32.totalorder %s19, 0
      %p133 = por %p131, %p132
      %p134 = scmp.ne.s32.totalorder %s123, %s126
      %p135 = scmp.eq.s32.totalorder %s24, 1
      %p136 = por %p134, %p135
      %p137 = scmp.ne.s32.totalorder %s126, %s127
      %p138 = scmp.eq.s32.totalorder %s24, 0
      %p139 = por %p137, %p138
      %p140 = scmp.ne.s32.totalorder %s126, %s127
      %p141 = scmp.eq.s32.totalorder %s25, 1
      %p142 = por %p140, %p141
      %p144 = scmp.ne.s32.totalorder %s127, %s143
      %p145 = scmp.eq.s32.totalorder %s25, 0
      %p146 = por %p144, %p145
      %p147 = scmp.le.s32.totalorder 1, %s19
      %p148 = scmp.lt.s32.totalorder %s19, 3
      %p149 = pnand %p147, %p148
      %p150 = pneg %p149
      // Predicated region
      $region9: #{tpu_custom_call.1} parent=5 // pred_check
        _
      $region10: #{tpu_custom_call.1} parent=5 // pred_check_branch
        %152 = sbr.rel (%p149) target = $region12
      $region11: #{tpu_custom_call.1} parent=5 // pred_region
        %s153 = ssub.s32 %s19, 1
        // Predicated region
        $region13: #{tpu_custom_call.1} parent=11 // pred_check
          %p154 = pneg %p92
        $region14: #{tpu_custom_call.1} parent=11 // pred_check_branch
          %156 = sbr.rel (%p154) target = $region16
        $region15: #{tpu_custom_call.1} parent=11 // pred_region
          %s158 = ssub.s32 2048, 2048
          %159 = vsyncadd [#allocation6], %s158
          %s160 = sshll.u32 [#allocation7], 4
          %s161 = int_to_ptr.vmem [resolvable:$true] %s160
          %166 = dma.hbm_to_vmem [thread:$0]  %s2, 2048, %s161, [#allocation6], 128, 128, 8
        $region16: #{tpu_custom_call.1} parent=11 // pred_fallthru
          _
        // Predicated region
        $region17: #{tpu_custom_call.1} parent=11 // pred_check
          %p167 = pneg %p113
        $region18: #{tpu_custom_call.1} parent=11 // pred_check_branch
          %169 = sbr.rel (%p167) target = $region20
        $region19: #{tpu_custom_call.1} parent=11 // pred_region
          _
        $region20: #{tpu_custom_call.1} parent=11 // pred_fallthru
          _
      $region12: #{tpu_custom_call.1} parent=5 // pred_fallthru
        _
      %p170 = scmp.lt.s32.totalorder %s19, 2
      // Predicated region
      $region21: #{tpu_custom_call.1} parent=5 // pred_check
        %p171 = pneg %p170
      $region22: #{tpu_custom_call.1} parent=5 // pred_check_branch
        %173 = sbr.rel (%p171) target = $region24
      $region23: #{tpu_custom_call.1} parent=5 // pred_region
        // Predicated region
        $region25: #{tpu_custom_call.1} parent=23 // pred_check
          %p174 = pneg %p39
        $region26: #{tpu_custom_call.1} parent=23 // pred_check_branch
          %176 = sbr.rel (%p174) target = $region28
        $region27: #{tpu_custom_call.1} parent=23 // pred_region
          %s177 = sand.u32 %s29, 1
          %s178 = scalar_lea.sflag [#allocation3], %s177
          %s179 = sand.u32 %s29, 1
          %s180 = smul.addr %s179, 8
          %s181 = scalar_lea.vmem [#allocation2], %s180
          %s183 = ssub.s32 128, 128
          %184 = vsyncadd %s178, %s183
          %s185 = smul.addr %s19, 128
          %s186 = scalar_lea.hbm %s0, %s185
          %s188 = sshll.u32 %s181, 4
          %s189 = int_to_ptr.vmem [resolvable:$true] %s188
          %191 = dma.hbm_to_vmem [thread:$0]  %s186, 128, %s189, %s178
        $region28: #{tpu_custom_call.1} parent=23 // pred_fallthru
          _
        // Predicated region
        $region29: #{tpu_custom_call.1} parent=23 // pred_check
          %p192 = pneg %p65
        $region30: #{tpu_custom_call.1} parent=23 // pred_check_branch
          %194 = sbr.rel (%p192) target = $region32
        $region31: #{tpu_custom_call.1} parent=23 // pred_region
          %s195 = sand.u32 %s19, 1
          %s196 = scalar_lea.sflag [#allocation6], %s195
          %s197 = sand.u32 %s55, 1
          %s198 = smul.addr %s197, 8
          %s199 = scalar_lea.vmem [#allocation5], %s198
          %s201 = ssub.s32 128, 128
          %202 = vsyncadd %s196, %s201
          %s203 = smul.addr %s19, 128
          %s204 = scalar_lea.hbm %s1, %s203
          %s206 = sshll.u32 %s199, 4
          %s207 = int_to_ptr.vmem [resolvable:$true] %s206
          %209 = dma.hbm_to_vmem [thread:$0]  %s204, 128, %s207, %s196
        $region32: #{tpu_custom_call.1} parent=23 // pred_fallthru
          _
      $region24: #{tpu_custom_call.1} parent=5 // pred_fallthru
        _
      %p210 = scmp.le.s32.totalorder 1, %s19
      %p211 = scmp.lt.s32.totalorder %s19, 3
      %p212 = pnand %p210, %p211
      %p213 = pneg %p212
      // Predicated region
      $region33: #{tpu_custom_call.1} parent=5 // pred_check
        _
      $region34: #{tpu_custom_call.1} parent=5 // pred_check_branch
        %215 = sbr.rel (%p212) target = $region36
      $region35: #{tpu_custom_call.1} parent=5 // pred_region
        %s216 = ssub.s32 %s19, 1
        %s217 = sand.u32 %s32, 1
        %s218 = scalar_lea.sflag [#allocation3], %s217
        %s219 = sand.u32 %s32, 1
        %s220 = smul.addr %s219, 8
        %s221 = scalar_lea.vmem [#allocation2], %s220
        // Predicated region
        $region37: #{tpu_custom_call.1} parent=35 // pred_check
          %p222 = pneg %p45
        $region38: #{tpu_custom_call.1} parent=35 // pred_check_branch
          %224 = sbr.rel (%p222) target = $region40
        $region39: #{tpu_custom_call.1} parent=35 // pred_region
          %225 = dma.done %s218, 128
        $region40: #{tpu_custom_call.1} parent=35 // pred_fallthru
          _
        %s226 = sand.u32 %s24, 1
        %s227 = scalar_lea.sflag [#allocation6], %s226
        %s228 = sand.u32 %s58, 1
        %s229 = smul.addr %s228, 8
        %s230 = scalar_lea.vmem [#allocation5], %s229
        // Predicated region
        $region41: #{tpu_custom_call.1} parent=35 // pred_check
          %p231 = pneg %p71
        $region42: #{tpu_custom_call.1} parent=35 // pred_check_branch
          %233 = sbr.rel (%p231) target = $region44
        $region43: #{tpu_custom_call.1} parent=35 // pred_region
          %234 = dma.done %s227, 128
        $region44: #{tpu_custom_call.1} parent=35 // pred_fallthru
          _
        // Predicated region
        $region45: #{tpu_custom_call.1} parent=35 // pred_check
          %p235 = pneg %p92
        $region46: #{tpu_custom_call.1} parent=35 // pred_check_branch
          %237 = sbr.rel (%p235) target = $region48
        $region47: #{tpu_custom_call.1} parent=35 // pred_region
          %238 = dma.done [#allocation6], 2048
        $region48: #{tpu_custom_call.1} parent=35 // pred_fallthru
          _
        %s239 = sand.u32 %s32, 1
        %s240 = scalar_lea.sflag [#allocation3], %s239
        %s241 = sand.u32 %s32, 1
        %s242 = smul.addr %s241, 8
        %s243 = scalar_lea.vmem [#allocation2], %s242
        %p244 = pneg %p45
        %p245 = pneg %p42
        %s246 = sand.u32 %s24, 1
        %s247 = scalar_lea.sflag [#allocation6], %s246
        %s248 = sand.u32 %s58, 1
        %s249 = smul.addr %s248, 8
        %s250 = scalar_lea.vmem [#allocation5], %s249
        %p251 = pneg %p71
        %p252 = pneg %p68
        %p253 = pneg %p92
        %p254 = pneg %p89
        %p255 = pneg %p113
        %p256 = pneg %p110
        %p257 = pneg %p139
        %p258 = pneg %p136
        %s259 = sand.u32 %s126, 1
        %s260 = scalar_lea.sflag [#allocation4], %s259
        %s261 = sand.u32 %s126, 1
        %s262 = smul.addr %s261, 8
        %s263 = scalar_lea.vmem [#allocation8], %s262
        %v264 = vld [vmem:[%s221] sm:$0xff]
        %v265 = vld [vmem:[#allocation7] sm:$0xff]
        %v266 = vld [vmem:[#allocation7 + $0x8] sm:$0xff]
        %v267 = vld [vmem:[#allocation7 + $0x10] sm:$0xff]
        %v268 = vld [vmem:[#allocation7 + $0x18] sm:$0xff]
        %v269 = vld [vmem:[#allocation7 + $0x20] sm:$0xff]
        %v270 = vld [vmem:[#allocation7 + $0x28] sm:$0xff]
        %v271 = vld [vmem:[#allocation7 + $0x30] sm:$0xff]
        %v272 = vld [vmem:[#allocation7 + $0x38] sm:$0xff]
        %v273 = vld [vmem:[#allocation7 + $0x40] sm:$0xff]
        %v274 = vld [vmem:[#allocation7 + $0x48] sm:$0xff]
        %v275 = vld [vmem:[#allocation7 + $0x50] sm:$0xff]
        %v276 = vld [vmem:[#allocation7 + $0x58] sm:$0xff]
        %v277 = vld [vmem:[#allocation7 + $0x60] sm:$0xff]
        %v278 = vld [vmem:[#allocation7 + $0x68] sm:$0xff]
        %v279 = vld [vmem:[#allocation7 + $0x70] sm:$0xff]
        %v280 = vld [vmem:[#allocation7 + $0x78] sm:$0xff]
        %v281 = vld [vmem:[%s3] sm:$0x7]
        %v282 = vlaneseq
        %v283 = vshrl.u32 %v282, 7
        %v284 = vsub.s32 0, %v283
        %v285 = vrot.slane %v281, %v284
        %286 = vmatprep.subr.mxu0 0.0
        %287 = vmatpush1.msra.mxu0 %v280
        %288 = vmatprep.subr.mxu0 0.0
        %289 = vmatpush1.msra.mxu0 %v279
        %290 = vmatprep.subr.mxu0 0.0
        %291 = vmatpush1.msra.mxu0 %v278
        %292 = vmatprep.subr.mxu0 0.0
        %293 = vmatpush1.msra.mxu0 %v277
        %294 = vmatprep.subr.mxu0 0.0
        %295 = vmatpush1.msra.mxu0 %v276
        %296 = vmatprep.subr.mxu0 0.0
        %297 = vmatpush1.msra.mxu0 %v275
        %298 = vmatprep.subr.mxu0 0.0
        %299 = vmatpush1.msra.mxu0 %v274
        %300 = vmatprep.subr.mxu0 0.0
        %301 = vmatpush1.msra.mxu0 %v273
        %302 = vmatprep.subr.mxu0 0.0
        %303 = vmatpush1.msra.mxu0 %v272
        %304 = vmatprep.subr.mxu0 0.0
        %305 = vmatpush1.msra.mxu0 %v271
        %306 = vmatprep.subr.mxu0 0.0
        %307 = vmatpush1.msra.mxu0 %v270
        %308 = vmatprep.subr.mxu0 0.0
        %309 = vmatpush1.msra.mxu0 %v269
        %310 = vmatprep.subr.mxu0 0.0
        %311 = vmatpush1.msra.mxu0 %v268
        %312 = vmatprep.subr.mxu0 0.0
        %313 = vmatpush1.msra.mxu0 %v267
        %314 = vmatprep.subr.mxu0 0.0
        %315 = vmatpush1.msra.mxu0 %v266
        %316 = vmatprep.subr.mxu0 0.0
        %317 = vmatpush1.msra.mxu0 %v265
        %318 = vmatprep.subr.mxu0 0.0
        %319 = vmatpush2.msra.mxu0 0.0
        %320 = vmatprep.subr.mxu0 0.0
        %321 = vmatpush2.msra.mxu0 0.0
        %322 = vmatprep.subr.mxu0 0.0
        %323 = vmatpush2.msra.mxu0 0.0
        %324 = vmatprep.subr.mxu0 0.0
        %325 = vmatpush2.msra.mxu0 0.0
        %326 = vmatprep.subr.mxu0 0.0
        %327 = vmatpush2.msra.mxu0 0.0
        %328 = vmatprep.subr.mxu0 0.0
        %329 = vmatpush2.msra.mxu0 0.0
        %330 = vmatprep.subr.mxu0 0.0
        %331 = vmatpush2.msra.mxu0 0.0
        %332 = vmatprep.subr.mxu0 0.0
        %333 = vmatpush2.msra.mxu0 0.0
        %334 = vmatprep.subr.mxu0 0.0
        %335 = vmatpush2.msra.mxu0 0.0
        %336 = vmatprep.subr.mxu0 0.0
        %337 = vmatpush2.msra.mxu0 0.0
        %338 = vmatprep.subr.mxu0 0.0
        %339 = vmatpush2.msra.mxu0 0.0
        %340 = vmatprep.subr.mxu0 0.0
        %341 = vmatpush2.msra.mxu0 0.0
        %342 = vmatprep.subr.mxu0 0.0
        %343 = vmatpush2.msra.mxu0 0.0
        %344 = vmatprep.subr.mxu0 0.0
        %345 = vmatpush2.msra.mxu0 0.0
        %346 = vmatprep.subr.mxu0 0.0
        %347 = vmatpush2.msra.mxu0 0.0
        %348 = vmatprep.subr.mxu0 0.0
        %349 = vmatpush2.msra.mxu0 0.0
        %350 = vmatprep.mubr.f32.mxu0 0.0
        %351 = vmatmul.mubr.f32.gmra.mxu0 %v264
        %v352 = vpop.f32.mrf.mxu0
        %v353 = vadd.f32 %v285, %v352
        %v354 = vpop.f32.mrf.mxu0
        %355 = vdwg.mxu0
        %v356 = vld [vmem:[%s230] sm:$0xff]
        %v357 = vadd.f32 %v353, %v356
        %358 = vadd.xlane.f32.xlu0 %v357
        %v359 = vpop.xlane.xlu0 %358
        %v360 = vmul.f32 %v359, 0.03125
        %v361 = vsub.f32 %v357, %v360
        %v362 = vlaneseq
        %v363 = vand.u32 %v362, 127
        %vm364 = vcmp.lt.s32.totalorder %v363, 32
        %v365 = vsel %vm364, 1, 0
        %vm366 = vcmp.eq.s32.totalorder %v365, 1
        %v367 = vsel %vm366, %v361, 0.0
        %v368 = vmul.f32 %v367, %v367
        %369 = vadd.xlane.f32.xlu0 %v368
        %v370 = vpop.xlane.xlu0 %369
        %v371 = vmul.f32 %v370, 0.03125
        %v372 = vadd.f32 %v371, 1e-12
        %v373 = vrsqrt.pop %v372
        %v374 = vmul.f32 %v367, %v373
        %v375 = vlaneseq
        %v376 = vshrl.u32 %v375, 7
        %v377 = vsub.s32 1, %v376
        %v378 = vrot.slane %v281, %v377
        %v379 = vmul.f32 %v374, %v378
        %v380 = vlaneseq
        %v381 = vshrl.u32 %v380, 7
        %v382 = vsub.s32 2, %v381
        %v383 = vrot.slane %v281, %v382
        %v384 = vadd.f32 %v379, %v383
        %385 = vst [vmem:[%s263] sm:$0xff] %v384
        %s386 = sand.u32 %s126, 1
        %s387 = scalar_lea.sflag [#allocation4], %s386
        %s388 = sand.u32 %s126, 1
        %s389 = smul.addr %s388, 8
        %s390 = scalar_lea.vmem [#allocation8], %s389
        // Predicated region
        $region49: #{tpu_custom_call.1} parent=35 // pred_check
          %p391 = pneg %p136
        $region50: #{tpu_custom_call.1} parent=35 // pred_check_branch
          %393 = sbr.rel (%p391) target = $region52
        $region51: #{tpu_custom_call.1} parent=35 // pred_region
          %s395 = ssub.s32 128, 128
          %396 = vsyncadd %s387, %s395
          %s397 = smul.addr %s24, 128
          %s398 = scalar_lea.hbm %s4, %s397
          %s400 = sshll.u32 %s390, 4
          %s401 = int_to_ptr.vmem [resolvable:$true] %s400
          %403 = dma.vmem_to_hbm [thread:$0]  %s401, 128, %s398, %s387
        $region52: #{tpu_custom_call.1} parent=35 // pred_fallthru
          _
      $region36: #{tpu_custom_call.1} parent=5 // pred_fallthru
        _
      %p404 = scmp.le.s32.totalorder 2, %s19
      // Predicated region
      $region53: #{tpu_custom_call.1} parent=5 // pred_check
        %p405 = pneg %p404
      $region54: #{tpu_custom_call.1} parent=5 // pred_check_branch
        %407 = sbr.rel (%p405) target = $region56
      $region55: #{tpu_custom_call.1} parent=5 // pred_region
        %s408 = ssub.s32 %s19, 2
        // Predicated region
        $region57: #{tpu_custom_call.1} parent=55 // pred_check
          %p409 = pneg %p142
        $region58: #{tpu_custom_call.1} parent=55 // pred_check_branch
          %411 = sbr.rel (%p409) target = $region60
        $region59: #{tpu_custom_call.1} parent=55 // pred_region
          %s412 = sand.u32 %s127, 1
          %s413 = scalar_lea.sflag [#allocation4], %s412
          %s414 = sand.u32 %s127, 1
          %s415 = smul.addr %s414, 8
          %s416 = scalar_lea.vmem [#allocation8], %s415
          %417 = dma.done %s413, 128
        $region60: #{tpu_custom_call.1} parent=55 // pred_fallthru
          _
      $region56: #{tpu_custom_call.1} parent=5 // pred_fallthru
        _
    $region6: #{tpu_custom_call.1} parent=1 // loop_footer
      %s23 = sadd.s32 1, %s19
    $region7: #{tpu_custom_call.1} parent=1 // loop_footer_branch
      %18 = sbr.rel target = $region3
    $region8: #{tpu_custom_call.1} parent=1 // loop_exit
      _
    %418 = vsyncpa [#allocation3], 1
    %s419 = scalar_lea.sflag [#allocation3], 1
    %420 = vsyncpa %s419, 1
    %421 = vsyncpa [#allocation6], 1
    %s422 = scalar_lea.sflag [#allocation6], 1
    %423 = vsyncpa %s422, 1
    %424 = vsyncpa [#allocation4], 1
    %s425 = scalar_lea.sflag [#allocation4], 1
    %426 = vsyncpa %s425, 1

</llo_original>
